<compile_context>
chip_gen: v7x
topology: tpu7x:2x2x1
jax: 0.10.0
libtpu: 0.0.40
codegen_flags: <defaults>
</compile_context>

<pallas_src>
import jax
import jax.numpy as jnp
from jax.experimental import pallas as pl
from jax.experimental.pallas import tpu as pltpu


def _round_up(n, m):
    return ((n + m - 1) // m) * m


def _sigmoid(x):
    # sigmoid(x) == 0.5 * tanh(0.5 * x) + 0.5 : one EUP op instead of
    # exp + divide.  The VPU (4 VALUs) has plenty of slack for the mul/add.
    return 0.5 * jnp.tanh(0.5 * x) + 0.5


def _mlp_kernel(x_ref, w1_ref, b1_ref, w2_ref, b2_ref, w3_ref, b3_ref, o_ref):
    x = x_ref[...]                                                # (rb, 128)

    # layer1: (rb,128) @ block-diag (128,960) -> (rb,960), f32 accumulate.
    h1 = _sigmoid(jnp.dot(x, w1_ref[...],
                          preferred_element_type=jnp.float32) + b1_ref[...])

    # layer2: (rb,960) @ block-diag (960,160) -> (rb,160)
    h2 = _sigmoid(jnp.dot(h1.astype(w2_ref.dtype), w2_ref[...],
                          preferred_element_type=jnp.float32) + b2_ref[...])

    # layer3: (rb,160) @ block-diag (160,16) -> (rb,16).  N=16 under-uses the
    # MXU but the MXU is nowhere near binding; EUP/vst are the scarce slots.
    h3 = jnp.dot(h2.astype(w3_ref.dtype), w3_ref[...],
                 preferred_element_type=jnp.float32) + b3_ref[...]
    o_ref[...] = _sigmoid(h3).astype(o_ref.dtype)


def diabetes_classifier_forward(x, params, *, block_rows=1024,
                                compute_dtype=jnp.float32,
                                vmem_limit_bytes=32 * 1024 * 1024):
    """x: (B, 8) f32.  params: torch-convention (out,in) weights, (out,1) biases.

    Returns (B, 1) f32 probabilities."""
    B, F = x.shape
    assert F == 8, "DiabetesClassifier expects 8 input features"
    GROUP = 128 // F                      # 16 batch rows per 128-lane row

    # Pad batch only up to a multiple of 16 (<=15 rows); the reshape below is
    # a free contiguous view — no transpose pass, no full-array pad pass.
    Bp = _round_up(B, GROUP)
    if Bp != B:
        x = jnp.concatenate([x, jnp.zeros((Bp - B, F), x.dtype)], axis=0)
    R = Bp // GROUP
    x_resh = x.reshape(R, GROUP * F).astype(compute_dtype)        # (R, 128)

    # Block-diagonal "interleave-aware" weights: W~ = kron(I16, W^T), so each
    # lane-group of 8 features contracts against its own copy of W.  Built
    # once; VMEM-resident (constant index_map) across all batch tiles.
    eye = jnp.eye(GROUP, dtype=compute_dtype)
    w1 = jnp.kron(eye, params["w1"].T.astype(compute_dtype))      # (128, 960)
    w2 = jnp.kron(eye, params["w2"].T.astype(compute_dtype))      # (960, 160)
    w3 = jnp.kron(eye, params["w3"].T.astype(compute_dtype))      # (160, 16)
    b1 = jnp.tile(params["b1"].reshape(1, -1), (1, GROUP)).astype(jnp.float32)
    b2 = jnp.tile(params["b2"].reshape(1, -1), (1, GROUP)).astype(jnp.float32)
    b3 = jnp.tile(params["b3"].reshape(1, -1), (1, GROUP)).astype(jnp.float32)

    # Batch tile: rb rows of x_resh = 16*rb batch rows.  Default 1024 rows
    # (16K batch rows) amortizes the ~0.35 us/step grid overhead; peak f32
    # VMEM (x/out double-buffers + weights + h1/h2 intermediates) stays well
    # under the 32 MiB scoped limit on every generation.
    if block_rows >= R:
        rb = R                            # single full-array block
    else:
        rb = max(8, (block_rows // 8) * 8)
    grid = (pl.cdiv(R, rb),)

    def const(a):                         # full block, fetched once, reused
        return pl.BlockSpec(a.shape, lambda i: (0,) * a.ndim)

    out = pl.pallas_call(
        _mlp_kernel,
        out_shape=jax.ShapeDtypeStruct((R, GROUP), jnp.float32),
        grid=grid,
        in_specs=[
            pl.BlockSpec((rb, GROUP * F), lambda i: (i, 0)),      # x tile
            const(w1), const(b1),
            const(w2), const(b2),
            const(w3), const(b3),
        ],
        out_specs=pl.BlockSpec((rb, GROUP), lambda i: (i, 0)),
        compiler_params=pltpu.CompilerParams(
            dimension_semantics=("parallel",),
            vmem_limit_bytes=vmem_limit_bytes),
    )(x_resh, w1, b1, w2, b2, w3, b3)

    # (R, 16) row-major is exactly batch order -> free reshape + cheap slice.
    return out.reshape(-1)[:B].reshape(B, 1)


def init_params(key):
    """torch.nn.Linear-style init: U(-1/sqrt(fan_in), 1/sqrt(fan_in)).

    Weights stored (out, in), biases (out, 1)."""
    ks = jax.random.split(key, 6)

    def uni(k, shape, fan_in):
        bound = 1.0 / jnp.sqrt(jnp.float32(fan_in))
        return jax.random.uniform(k, shape, jnp.float32, -bound, bound)

    return {
        "w1": uni(ks[0], (60, 8), 8),   "b1": uni(ks[1], (60, 1), 8),
        "w2": uni(ks[2], (10, 60), 60), "b2": uni(ks[3], (10, 1), 60),
        "w3": uni(ks[4], (1, 10), 10),  "b3": uni(ks[5], (1, 1), 10),
    }


def reference_forward(x, params):
    h1 = jax.nn.sigmoid(x @ params["w1"].T + params["b1"].T)
    h2 = jax.nn.sigmoid(h1 @ params["w2"].T + params["b2"].T)
    return jax.nn.sigmoid(h2 @ params["w3"].T + params["b3"].T)


if __name__ == "__main__":
    key = jax.random.PRNGKey(0)
    k_params, k_x1, k_x2 = jax.random.split(key, 3)
    params = init_params(k_params)

    # Small batch consistent with nn.Linear(8, 60): batch=8, 8 features.
    # Pads to one 16-row group -> single grid step.
    x_small = jax.random.normal(k_x1, (8, 8), dtype=jnp.float32)
    out_small = jax.block_until_ready(
        diabetes_classifier_forward(x_small, params))
    ref_small = reference_forward(x_small, params)
    assert out_small.shape == (8, 1)
    assert jnp.allclose(out_small, ref_small, atol=1e-5, rtol=1e-5), \
        "small-batch mismatch vs reference"

    # Ragged batch: 300 rows with block_rows=8 -> 3 grid steps, exercises the
    # masked partial last block and the 4-row pad path.
    x_big = jax.random.normal(k_x2, (300, 8), dtype=jnp.float32)
    out_big = jax.block_until_ready(
        diabetes_classifier_forward(x_big, params, block_rows=8))
    ref_big = reference_forward(x_big, params)
    assert out_big.shape == (300, 1)
    assert jnp.allclose(out_big, ref_big, atol=1e-5, rtol=1e-5), \
        "tiled-batch mismatch vs reference"

    print("KERNEL_OK")
</pallas_src>

<mosaic_0001>
module attributes {stable_mosaic.version = 11 : i64} {
  func.func @_mlp_kernel(%arg0: i32, %arg1: memref<1x128xf32, #tpu.memory_space<vmem>>, %arg2: memref<128x960xf32, #tpu.memory_space<vmem>>, %arg3: memref<1x960xf32, #tpu.memory_space<vmem>>, %arg4: memref<960x160xf32, #tpu.memory_space<vmem>>, %arg5: memref<1x160xf32, #tpu.memory_space<vmem>>, %arg6: memref<160x16xf32, #tpu.memory_space<vmem>>, %arg7: memref<1x16xf32, #tpu.memory_space<vmem>>, %arg8: memref<1x16xf32, #tpu.memory_space<vmem>>) attributes {dimension_semantics = [#tpu.dimension_semantics<parallel>], iteration_bounds = array<i64: 1>, scalar_prefetch = 0 : i64, scratch_operands = 0 : i64, tpu.core_type = #tpu.core_type<tc>, window_params = [{transform_indices = @transform_0, window_bounds = array<i64: 1, 128>}, {pipeline_mode = #tpu.pipeline_mode<synchronous>, transform_indices = @transform_1, window_bounds = array<i64: 128, 960>}, {pipeline_mode = #tpu.pipeline_mode<synchronous>, transform_indices = @transform_2, window_bounds = array<i64: 1, 960>}, {pipeline_mode = #tpu.pipeline_mode<synchronous>, transform_indices = @transform_3, window_bounds = array<i64: 960, 160>}, {pipeline_mode = #tpu.pipeline_mode<synchronous>, transform_indices = @transform_4, window_bounds = array<i64: 1, 160>}, {pipeline_mode = #tpu.pipeline_mode<synchronous>, transform_indices = @transform_5, window_bounds = array<i64: 160, 16>}, {pipeline_mode = #tpu.pipeline_mode<synchronous>, transform_indices = @transform_6, window_bounds = array<i64: 1, 16>}, {transform_indices = @transform_7, window_bounds = array<i64: 1, 16>}]} {
    %c0 = arith.constant 0 : index
    %c0_0 = arith.constant 0 : index
    %0 = vector.load %arg1[%c0, %c0_0] : memref<1x128xf32, #tpu.memory_space<vmem>>, vector<1x128xf32>
    %c0_1 = arith.constant 0 : index
    %c0_2 = arith.constant 0 : index
    %1 = vector.load %arg2[%c0_1, %c0_2] : memref<128x960xf32, #tpu.memory_space<vmem>>, vector<128x960xf32>
    %cst = arith.constant dense<0.000000e+00> : vector<1x960xf32>
    %2 = tpu.matmul %0, %1, %cst {dimension_numbers = #tpu.dot_dimension_numbers<[1], [0], [0], [1], [0, 0, 1, 1], [], []>} : vector<1x128xf32>, vector<128x960xf32>, vector<1x960xf32> -> vector<1x960xf32>
    %c0_3 = arith.constant 0 : index
    %c0_4 = arith.constant 0 : index
    %3 = vector.load %arg3[%c0_3, %c0_4] : memref<1x960xf32, #tpu.memory_space<vmem>>, vector<1x960xf32>
    %4 = arith.addf %2, %3 : vector<1x960xf32>
    %cst_5 = arith.constant 5.000000e-01 : f32
    %5 = vector.broadcast %cst_5 : f32 to vector<1x960xf32>
    %6 = arith.mulf %5, %4 : vector<1x960xf32>
    %7 = math.tanh %6 : vector<1x960xf32>
    %cst_6 = arith.constant 5.000000e-01 : f32
    %8 = vector.broadcast %cst_6 : f32 to vector<1x960xf32>
    %9 = arith.mulf %8, %7 : vector<1x960xf32>
    %cst_7 = arith.constant 5.000000e-01 : f32
    %10 = vector.broadcast %cst_7 : f32 to vector<1x960xf32>
    %11 = arith.addf %9, %10 : vector<1x960xf32>
    %c0_8 = arith.constant 0 : index
    %c0_9 = arith.constant 0 : index
    %12 = vector.load %arg4[%c0_8, %c0_9] : memref<960x160xf32, #tpu.memory_space<vmem>>, vector<960x160xf32>
    %cst_10 = arith.constant dense<0.000000e+00> : vector<1x160xf32>
    %13 = tpu.matmul %11, %12, %cst_10 {dimension_numbers = #tpu.dot_dimension_numbers<[1], [0], [0], [1], [0, 0, 1, 1], [], []>} : vector<1x960xf32>, vector<960x160xf32>, vector<1x160xf32> -> vector<1x160xf32>
    %c0_11 = arith.constant 0 : index
    %c0_12 = arith.constant 0 : index
    %14 = vector.load %arg5[%c0_11, %c0_12] : memref<1x160xf32, #tpu.memory_space<vmem>>, vector<1x160xf32>
    %15 = arith.addf %13, %14 : vector<1x160xf32>
    %cst_13 = arith.constant 5.000000e-01 : f32
    %16 = vector.broadcast %cst_13 : f32 to vector<1x160xf32>
    %17 = arith.mulf %16, %15 : vector<1x160xf32>
    %18 = math.tanh %17 : vector<1x160xf32>
    %cst_14 = arith.constant 5.000000e-01 : f32
    %19 = vector.broadcast %cst_14 : f32 to vector<1x160xf32>
    %20 = arith.mulf %19, %18 : vector<1x160xf32>
    %cst_15 = arith.constant 5.000000e-01 : f32
    %21 = vector.broadcast %cst_15 : f32 to vector<1x160xf32>
    %22 = arith.addf %20, %21 : vector<1x160xf32>
    %c0_16 = arith.constant 0 : index
    %c0_17 = arith.constant 0 : index
    %23 = vector.load %arg6[%c0_16, %c0_17] : memref<160x16xf32, #tpu.memory_space<vmem>>, vector<160x16xf32>
    %cst_18 = arith.constant dense<0.000000e+00> : vector<1x16xf32>
    %24 = tpu.matmul %22, %23, %cst_18 {dimension_numbers = #tpu.dot_dimension_numbers<[1], [0], [0], [1], [0, 0, 1, 1], [], []>} : vector<1x160xf32>, vector<160x16xf32>, vector<1x16xf32> -> vector<1x16xf32>
    %c0_19 = arith.constant 0 : index
    %c0_20 = arith.constant 0 : index
    %25 = vector.load %arg7[%c0_19, %c0_20] : memref<1x16xf32, #tpu.memory_space<vmem>>, vector<1x16xf32>
    %26 = arith.addf %24, %25 : vector<1x16xf32>
    %cst_21 = arith.constant 5.000000e-01 : f32
    %27 = vector.broadcast %cst_21 : f32 to vector<1x16xf32>
    %28 = arith.mulf %27, %26 : vector<1x16xf32>
    %29 = math.tanh %28 : vector<1x16xf32>
    %cst_22 = arith.constant 5.000000e-01 : f32
    %30 = vector.broadcast %cst_22 : f32 to vector<1x16xf32>
    %31 = arith.mulf %30, %29 : vector<1x16xf32>
    %cst_23 = arith.constant 5.000000e-01 : f32
    %32 = vector.broadcast %cst_23 : f32 to vector<1x16xf32>
    %33 = arith.addf %31, %32 : vector<1x16xf32>
    %c0_24 = arith.constant 0 : index
    %c0_25 = arith.constant 0 : index
    %34 = vector.load %arg8[%c0_24, %c0_25] : memref<1x16xf32, #tpu.memory_space<vmem>>, vector<1x16xf32>
    tpu.vector_store %arg8[%c0_24, %c0_25], %33 {strides = array<i32>} : memref<1x16xf32, #tpu.memory_space<vmem>>, vector<1x16xf32>,
    return
  }
  func.func @transform_0(%arg0: i32) -> (i32, i32) {
    %c0_i32 = arith.constant 0 : i32
    %c0_i32_0 = arith.constant 0 : i32
    return %arg0, %c0_i32 : i32, i32
  }
  func.func @transform_1(%arg0: i32) -> (i32, i32) {
    %c0_i32 = arith.constant 0 : i32
    %c0_i32_0 = arith.constant 0 : i32
    %c0_i32_1 = arith.constant 0 : i32
    return %c0_i32, %c0_i32_0 : i32, i32
  }
  func.func @transform_2(%arg0: i32) -> (i32, i32) {
    %c0_i32 = arith.constant 0 : i32
    %c0_i32_0 = arith.constant 0 : i32
    %c0_i32_1 = arith.constant 0 : i32
    return %c0_i32, %c0_i32_0 : i32, i32
  }
  func.func @transform_3(%arg0: i32) -> (i32, i32) {
    %c0_i32 = arith.constant 0 : i32
    %c0_i32_0 = arith.constant 0 : i32
    %c0_i32_1 = arith.constant 0 : i32
    return %c0_i32, %c0_i32_0 : i32, i32
  }
  func.func @transform_4(%arg0: i32) -> (i32, i32) {
    %c0_i32 = arith.constant 0 : i32
    %c0_i32_0 = arith.constant 0 : i32
    %c0_i32_1 = arith.constant 0 : i32
    return %c0_i32, %c0_i32_0 : i32, i32
  }
  func.func @transform_5(%arg0: i32) -> (i32, i32) {
    %c0_i32 = arith.constant 0 : i32
    %c0_i32_0 = arith.constant 0 : i32
    %c0_i32_1 = arith.constant 0 : i32
    return %c0_i32, %c0_i32_0 : i32, i32
  }
  func.func @transform_6(%arg0: i32) -> (i32, i32) {
    %c0_i32 = arith.constant 0 : i32
    %c0_i32_0 = arith.constant 0 : i32
    %c0_i32_1 = arith.constant 0 : i32
    return %c0_i32, %c0_i32_0 : i32, i32
  }
  func.func @transform_7(%arg0: i32) -> (i32, i32) {
    %c0_i32 = arith.constant 0 : i32
    %c0_i32_0 = arith.constant 0 : i32
    return %arg0, %c0_i32 : i32, i32
  }
}

</mosaic_0001>

<llo_original>
// kernel: tpu_custom_call.1
$region0: #{tpu_custom_call.1}
  #allocation0 [shape = 'u32[]', space=smem, size = 0x4, offset = 0x4, fixed_abs, tag = 'smem constant byte address 0x4 - core index']
  #allocation1 [shape = 'u32[144,128]{1,0:T(1,128)}', space=vmem, size = 0x12000, scoped, tag = 'internal scratch']
  %s0 = inlined_call_operand.vmem [shape: f32[1,128], index: 0, kind: input, shape index: {}]
  %s1 = inlined_call_operand.vmem [shape: f32[128,960], index: 1, kind: input, shape index: {}]
  %s2 = inlined_call_operand.vmem [shape: f32[1,960], index: 2, kind: input, shape index: {}]
  %s3 = inlined_call_operand.vmem [shape: f32[960,160], index: 3, kind: input, shape index: {}]
  %s4 = inlined_call_operand.vmem [shape: f32[1,160], index: 4, kind: input, shape index: {}]
  %s5 = inlined_call_operand.vmem [shape: f32[160,16], index: 5, kind: input, shape index: {}]
  %s6 = inlined_call_operand.vmem [shape: f32[1,16], index: 6, kind: input, shape index: {}]
  %s7 = inlined_call_operand.hbm [shape: f32[1,16], index: 7, kind: output, shape index: {}]
  %s8 = sld [smem:[#allocation0]]
  $region38: #{tpu_custom_call.1} parent=0
    _
  %s10 = ssub.s32 1, %s8
  %s11 = scalar_select 0, %s10, %s8
  $region1: #{tpu_custom_call.1} parent=0
    #allocation2 [shape = 'u8[512]{0}', space=vmem, size = 0x400, scoped, tag = 'output window, operand 0, single buffered']
    #allocation3 [shape = 's32[1]{0}', space=sflag, size = 0x4, scoped, tag = 'scoped memory for tpu_custom_call.1']
    %12 = vsyncpa [#allocation3], 0
    // Predicated region
    $region2: #{tpu_custom_call.1} parent=1 // pred_check
      _
    $region3: #{tpu_custom_call.1} parent=1 // pred_check_branch
      %14 = sbr.rel (0) target = $region5
    $region4: #{tpu_custom_call.1} parent=1 // pred_region
      _
    $region5: #{tpu_custom_call.1} parent=1 // pred_fallthru
      _
    // Predicated region
    $region6: #{tpu_custom_call.1} parent=1 // pred_check
      _
    $region7: #{tpu_custom_call.1} parent=1 // pred_check_branch
      %16 = sbr.rel (0) target = $region9
    $region8: #{tpu_custom_call.1} parent=1 // pred_region
      _
    $region9: #{tpu_custom_call.1} parent=1 // pred_fallthru
      _
    // Predicated region
    $region10: #{tpu_custom_call.1} parent=1 // pred_check
      _
    $region11: #{tpu_custom_call.1} parent=1 // pred_check_branch
      %18 = sbr.rel (0) target = $region13
    $region12: #{tpu_custom_call.1} parent=1 // pred_region
      _
    $region13: #{tpu_custom_call.1} parent=1 // pred_fallthru
      _
    // Predicated region
    $region14: #{tpu_custom_call.1} parent=1 // pred_check
      _
    $region15: #{tpu_custom_call.1} parent=1 // pred_check_branch
      %20 = sbr.rel (0) target = $region17
    $region16: #{tpu_custom_call.1} parent=1 // pred_region
      _
    $region17: #{tpu_custom_call.1} parent=1 // pred_fallthru
      _
    // Predicated region
    $region18: #{tpu_custom_call.1} parent=1 // pred_check
      _
    $region19: #{tpu_custom_call.1} parent=1 // pred_check_branch
      %22 = sbr.rel (0) target = $region21
    $region20: #{tpu_custom_call.1} parent=1 // pred_region
      _
    $region21: #{tpu_custom_call.1} parent=1 // pred_fallthru
      _
    // Predicated region
    $region22: #{tpu_custom_call.1} parent=1 // pred_check
      _
    $region23: #{tpu_custom_call.1} parent=1 // pred_check_branch
      %24 = sbr.rel (0) target = $region25
    $region24: #{tpu_custom_call.1} parent=1 // pred_region
      _
    $region25: #{tpu_custom_call.1} parent=1 // pred_fallthru
      _
    // Predicated region
    $region26: #{tpu_custom_call.1} parent=1 // pred_check
      _
    $region27: #{tpu_custom_call.1} parent=1 // pred_check_branch
      %26 = sbr.rel (0) target = $region29
    $region28: #{tpu_custom_call.1} parent=1 // pred_region
      _
    $region29: #{tpu_custom_call.1} parent=1 // pred_fallthru
      _
    %v27 = vld [vmem:[%s0] sm:$0x1]
    %v28 = vld [vmem:[%s1] sm:$0xff]
    %v29 = vld [vmem:[%s1 + $0x8] sm:$0xff]
    %v30 = vld [vmem:[%s1 + $0x10] sm:$0xff]
    %v31 = vld [vmem:[%s1 + $0x18] sm:$0xff]
    %v32 = vld [vmem:[%s1 + $0x20] sm:$0xff]
    %v33 = vld [vmem:[%s1 + $0x28] sm:$0xff]
    %v34 = vld [vmem:[%s1 + $0x30] sm:$0xff]
    %v35 = vld [vmem:[%s1 + $0x38] sm:$0xff]
    %v36 = vld [vmem:[%s1 + $0x40] sm:$0xff]
    %v37 = vld [vmem:[%s1 + $0x48] sm:$0xff]
    %v38 = vld [vmem:[%s1 + $0x50] sm:$0xff]
    %v39 = vld [vmem:[%s1 + $0x58] sm:$0xff]
    %v40 = vld [vmem:[%s1 + $0x60] sm:$0xff]
    %v41 = vld [vmem:[%s1 + $0x68] sm:$0xff]
    %v42 = vld [vmem:[%s1 + $0x70] sm:$0xff]
    %v43 = vld [vmem:[%s1 + $0x78] sm:$0xff]
    %v44 = vld [vmem:[%s1 + $0x80] sm:$0xff]
    %v45 = vld [vmem:[%s1 + $0x88] sm:$0xff]
    %v46 = vld [vmem:[%s1 + $0x90] sm:$0xff]
    %v47 = vld [vmem:[%s1 + $0x98] sm:$0xff]
    %v48 = vld [vmem:[%s1 + $0xa0] sm:$0xff]
    %v49 = vld [vmem:[%s1 + $0xa8] sm:$0xff]
    %v50 = vld [vmem:[%s1 + $0xb0] sm:$0xff]
    %v51 = vld [vmem:[%s1 + $0xb8] sm:$0xff]
    %v52 = vld [vmem:[%s1 + $0xc0] sm:$0xff]
    %v53 = vld [vmem:[%s1 + $0xc8] sm:$0xff]
    %v54 = vld [vmem:[%s1 + $0xd0] sm:$0xff]
    %v55 = vld [vmem:[%s1 + $0xd8] sm:$0xff]
    %v56 = vld [vmem:[%s1 + $0xe0] sm:$0xff]
    %v57 = vld [vmem:[%s1 + $0xe8] sm:$0xff]
    %v58 = vld [vmem:[%s1 + $0xf0] sm:$0xff]
    %v59 = vld [vmem:[%s1 + $0xf8] sm:$0xff]
    %v60 = vld [vmem:[%s1 + $0x100] sm:$0xff]
    %v61 = vld [vmem:[%s1 + $0x108] sm:$0xff]
    %v62 = vld [vmem:[%s1 + $0x110] sm:$0xff]
    %v63 = vld [vmem:[%s1 + $0x118] sm:$0xff]
    %v64 = vld [vmem:[%s1 + $0x120] sm:$0xff]
    %v65 = vld [vmem:[%s1 + $0x128] sm:$0xff]
    %v66 = vld [vmem:[%s1 + $0x130] sm:$0xff]
    %v67 = vld [vmem:[%s1 + $0x138] sm:$0xff]
    %v68 = vld [vmem:[%s1 + $0x140] sm:$0xff]
    %v69 = vld [vmem:[%s1 + $0x148] sm:$0xff]
    %v70 = vld [vmem:[%s1 + $0x150] sm:$0xff]
    %v71 = vld [vmem:[%s1 + $0x158] sm:$0xff]
    %v72 = vld [vmem:[%s1 + $0x160] sm:$0xff]
    %v73 = vld [vmem:[%s1 + $0x168] sm:$0xff]
    %v74 = vld [vmem:[%s1 + $0x170] sm:$0xff]
    %v75 = vld [vmem:[%s1 + $0x178] sm:$0xff]
    %v76 = vld [vmem:[%s1 + $0x180] sm:$0xff]
    %v77 = vld [vmem:[%s1 + $0x188] sm:$0xff]
    %v78 = vld [vmem:[%s1 + $0x190] sm:$0xff]
    %v79 = vld [vmem:[%s1 + $0x198] sm:$0xff]
    %v80 = vld [vmem:[%s1 + $0x1a0] sm:$0xff]
    %v81 = vld [vmem:[%s1 + $0x1a8] sm:$0xff]
    %v82 = vld [vmem:[%s1 + $0x1b0] sm:$0xff]
    %v83 = vld [vmem:[%s1 + $0x1b8] sm:$0xff]
    %v84 = vld [vmem:[%s1 + $0x1c0] sm:$0xff]
    %v85 = vld [vmem:[%s1 + $0x1c8] sm:$0xff]
    %v86 = vld [vmem:[%s1 + $0x1d0] sm:$0xff]
    %v87 = vld [vmem:[%s1 + $0x1d8] sm:$0xff]
    %v88 = vld [vmem:[%s1 + $0x1e0] sm:$0xff]
    %v89 = vld [vmem:[%s1 + $0x1e8] sm:$0xff]
    %v90 = vld [vmem:[%s1 + $0x1f0] sm:$0xff]
    %v91 = vld [vmem:[%s1 + $0x1f8] sm:$0xff]
    %v92 = vld [vmem:[%s1 + $0x200] sm:$0xff]
    %v93 = vld [vmem:[%s1 + $0x208] sm:$0xff]
    %v94 = vld [vmem:[%s1 + $0x210] sm:$0xff]
    %v95 = vld [vmem:[%s1 + $0x218] sm:$0xff]
    %v96 = vld [vmem:[%s1 + $0x220] sm:$0xff]
    %v97 = vld [vmem:[%s1 + $0x228] sm:$0xff]
    %v98 = vld [vmem:[%s1 + $0x230] sm:$0xff]
    %v99 = vld [vmem:[%s1 + $0x238] sm:$0xff]
    %v100 = vld [vmem:[%s1 + $0x240] sm:$0xff]
    %v101 = vld [vmem:[%s1 + $0x248] sm:$0xff]
    %v102 = vld [vmem:[%s1 + $0x250] sm:$0xff]
    %v103 = vld [vmem:[%s1 + $0x258] sm:$0xff]
    %v104 = vld [vmem:[%s1 + $0x260] sm:$0xff]
    %v105 = vld [vmem:[%s1 + $0x268] sm:$0xff]
    %v106 = vld [vmem:[%s1 + $0x270] sm:$0xff]
    %v107 = vld [vmem:[%s1 + $0x278] sm:$0xff]
    %v108 = vld [vmem:[%s1 + $0x280] sm:$0xff]
    %v109 = vld [vmem:[%s1 + $0x288] sm:$0xff]
    %v110 = vld [vmem:[%s1 + $0x290] sm:$0xff]
    %v111 = vld [vmem:[%s1 + $0x298] sm:$0xff]
    %v112 = vld [vmem:[%s1 + $0x2a0] sm:$0xff]
    %v113 = vld [vmem:[%s1 + $0x2a8] sm:$0xff]
    %v114 = vld [vmem:[%s1 + $0x2b0] sm:$0xff]
    %v115 = vld [vmem:[%s1 + $0x2b8] sm:$0xff]
    %v116 = vld [vmem:[%s1 + $0x2c0] sm:$0xff]
    %v117 = vld [vmem:[%s1 + $0x2c8] sm:$0xff]
    %v118 = vld [vmem:[%s1 + $0x2d0] sm:$0xff]
    %v119 = vld [vmem:[%s1 + $0x2d8] sm:$0xff]
    %v120 = vld [vmem:[%s1 + $0x2e0] sm:$0xff]
    %v121 = vld [vmem:[%s1 + $0x2e8] sm:$0xff]
    %v122 = vld [vmem:[%s1 + $0x2f0] sm:$0xff]
    %v123 = vld [vmem:[%s1 + $0x2f8] sm:$0xff]
    %v124 = vld [vmem:[%s1 + $0x300] sm:$0xff]
    %v125 = vld [vmem:[%s1 + $0x308] sm:$0xff]
    %v126 = vld [vmem:[%s1 + $0x310] sm:$0xff]
    %v127 = vld [vmem:[%s1 + $0x318] sm:$0xff]
    %v128 = vld [vmem:[%s1 + $0x320] sm:$0xff]
    %v129 = vld [vmem:[%s1 + $0x328] sm:$0xff]
    %v130 = vld [vmem:[%s1 + $0x330] sm:$0xff]
    %v131 = vld [vmem:[%s1 + $0x338] sm:$0xff]
    %v132 = vld [vmem:[%s1 + $0x340] sm:$0xff]
    %v133 = vld [vmem:[%s1 + $0x348] sm:$0xff]
    %v134 = vld [vmem:[%s1 + $0x350] sm:$0xff]
    %v135 = vld [vmem:[%s1 + $0x358] sm:$0xff]
    %v136 = vld [vmem:[%s1 + $0x360] sm:$0xff]
    %v137 = vld [vmem:[%s1 + $0x368] sm:$0xff]
    %v138 = vld [vmem:[%s1 + $0x370] sm:$0xff]
    %v139 = vld [vmem:[%s1 + $0x378] sm:$0xff]
    %v140 = vld [vmem:[%s1 + $0x380] sm:$0xff]
    %v141 = vld [vmem:[%s1 + $0x388] sm:$0xff]
    %v142 = vld [vmem:[%s1 + $0x390] sm:$0xff]
    %v143 = vld [vmem:[%s1 + $0x398] sm:$0xff]
    %v144 = vld [vmem:[%s1 + $0x3a0] sm:$0xff]
    %v145 = vld [vmem:[%s1 + $0x3a8] sm:$0xff]
    %v146 = vld [vmem:[%s1 + $0x3b0] sm:$0xff]
    %v147 = vld [vmem:[%s1 + $0x3b8] sm:$0xff]
    %v148 = vld [vmem:[%s1 + $0x3c0] sm:$0xff]
    %v149 = vld [vmem:[%s1 + $0x3c8] sm:$0xff]
    %v150 = vld [vmem:[%s1 + $0x3d0] sm:$0xff]
    %v151 = vld [vmem:[%s1 + $0x3d8] sm:$0xff]
    %v152 = vld [vmem:[%s1 + $0x3e0] sm:$0xff]
    %v153 = vld [vmem:[%s1 + $0x3e8] sm:$0xff]
    %v154 = vld [vmem:[%s1 + $0x3f0] sm:$0xff]
    %v155 = vld [vmem:[%s1 + $0x3f8] sm:$0xff]
    %v156 = vld [vmem:[%s2] sm:$0xff]
    %v158 = vlaneseq
    %v159 = vshrl.u32 %v158, 7
    %v160 = vsub.s32 0, %v159
    %v161 = vrot.slane %v156, %v160
    %v162 = vlaneseq
    %v163 = vshrl.u32 %v162, 7
    %v164 = vsub.s32 1, %v163
    %v165 = vrot.slane %v156, %v164
    %v166 = vlaneseq
    %v167 = vshrl.u32 %v166, 7
    %v168 = vsub.s32 2, %v167
    %v169 = vrot.slane %v156, %v168
    %v170 = vlaneseq
    %v171 = vshrl.u32 %v170, 7
    %v172 = vsub.s32 3, %v171
    %v173 = vrot.slane %v156, %v172
    %v174 = vlaneseq
    %v175 = vshrl.u32 %v174, 7
    %v176 = vsub.s32 4, %v175
    %v177 = vrot.slane %v156, %v176
    %v178 = vlaneseq
    %v179 = vshrl.u32 %v178, 7
    %v180 = vsub.s32 5, %v179
    %v181 = vrot.slane %v156, %v180
    %v182 = vlaneseq
    %v183 = vshrl.u32 %v182, 7
    %v184 = vsub.s32 6, %v183
    %v185 = vrot.slane %v156, %v184
    %v186 = vlaneseq
    %v187 = vshrl.u32 %v186, 7
    %v188 = vsub.s32 7, %v187
    %v189 = vrot.slane %v156, %v188
    %198 = vmatprep.subr.mxu0 %v29
    %199 = vmatpush1.msra.mxu0 %v28
    %200 = vmatprep.subr.mxu0 %v37
    %201 = vmatpush1.msra.mxu0 %v36
    %202 = vmatprep.subr.mxu0 %v45
    %203 = vmatpush1.msra.mxu0 %v44
    %204 = vmatprep.subr.mxu0 %v53
    %205 = vmatpush1.msra.mxu0 %v52
    %206 = vmatprep.subr.mxu0 %v61
    %207 = vmatpush1.msra.mxu0 %v60
    %208 = vmatprep.subr.mxu0 %v69
    %209 = vmatpush1.msra.mxu0 %v68
    %210 = vmatprep.subr.mxu0 %v77
    %211 = vmatpush1.msra.mxu0 %v76
    %212 = vmatprep.subr.mxu0 %v85
    %213 = vmatpush1.msra.mxu0 %v84
    %214 = vmatprep.subr.mxu0 %v93
    %215 = vmatpush1.msra.mxu0 %v92
    %216 = vmatprep.subr.mxu0 %v101
    %217 = vmatpush1.msra.mxu0 %v100
    %218 = vmatprep.subr.mxu0 %v109
    %219 = vmatpush1.msra.mxu0 %v108
    %220 = vmatprep.subr.mxu0 %v117
    %221 = vmatpush1.msra.mxu0 %v116
    %222 = vmatprep.subr.mxu0 %v125
    %223 = vmatpush1.msra.mxu0 %v124
    %224 = vmatprep.subr.mxu0 %v133
    %225 = vmatpush1.msra.mxu0 %v132
    %226 = vmatprep.subr.mxu0 %v141
    %227 = vmatpush1.msra.mxu0 %v140
    %228 = vmatprep.subr.mxu0 %v149
    %229 = vmatpush1.msra.mxu0 %v148
    %230 = vmatprep.subr.mxu0 0.0
    %231 = vmatpush1.msra.mxu0 0.0
    %232 = vmatprep.subr.mxu0 0.0
    %233 = vmatpush1.msra.mxu0 0.0
    %234 = vmatprep.subr.mxu0 0.0
    %235 = vmatpush1.msra.mxu0 0.0
    %236 = vmatprep.subr.mxu0 0.0
    %237 = vmatpush1.msra.mxu0 0.0
    %238 = vmatprep.subr.mxu0 0.0
    %239 = vmatpush1.msra.mxu0 0.0
    %240 = vmatprep.subr.mxu0 0.0
    %241 = vmatpush1.msra.mxu0 0.0
    %242 = vmatprep.subr.mxu0 0.0
    %243 = vmatpush1.msra.mxu0 0.0
    %244 = vmatprep.subr.mxu0 0.0
    %245 = vmatpush1.msra.mxu0 0.0
    %246 = vmatprep.subr.mxu0 0.0
    %247 = vmatpush1.msra.mxu0 0.0
    %248 = vmatprep.subr.mxu0 0.0
    %249 = vmatpush1.msra.mxu0 0.0
    %250 = vmatprep.subr.mxu0 0.0
    %251 = vmatpush1.msra.mxu0 0.0
    %252 = vmatprep.subr.mxu0 0.0
    %253 = vmatpush1.msra.mxu0 0.0
    %254 = vmatprep.subr.mxu0 0.0
    %255 = vmatpush1.msra.mxu0 0.0
    %256 = vmatprep.subr.mxu0 0.0
    %257 = vmatpush1.msra.mxu0 0.0
    %258 = vmatprep.subr.mxu0 0.0
    %259 = vmatpush1.msra.mxu0 0.0
    %260 = vmatprep.subr.mxu0 0.0
    %261 = vmatpush1.msra.mxu0 0.0
    %262 = vmatprep.mubr.f32.mxu0 0.0
    %263 = vmatmul.mubr.f32.gmra.mrb[0].mxu0 %v27
    %v264 = vpop.f32.mrb[0].mxu0
    %v265 = vadd.f32 %v161, %v264
    %v266 = vpop.f32.mrb[0].mxu0
    %v267 = vadd.f32 %v165, %v266
    %268 = vdwg.mxu0
    %269 = vmatprep.subr.mxu0 %v31
    %270 = vmatpush1.msra.mxu0 %v30
    %271 = vmatprep.subr.mxu0 %v39
    %272 = vmatpush1.msra.mxu0 %v38
    %273 = vmatprep.subr.mxu0 %v47
    %274 = vmatpush1.msra.mxu0 %v46
    %275 = vmatprep.subr.mxu0 %v55
    %276 = vmatpush1.msra.mxu0 %v54
    %277 = vmatprep.subr.mxu0 %v63
    %278 = vmatpush1.msra.mxu0 %v62
    %279 = vmatprep.subr.mxu0 %v71
    %280 = vmatpush1.msra.mxu0 %v70
    %281 = vmatprep.subr.mxu0 %v79
    %282 = vmatpush1.msra.mxu0 %v78
    %283 = vmatprep.subr.mxu0 %v87
    %284 = vmatpush1.msra.mxu0 %v86
    %285 = vmatprep.subr.mxu0 %v95
    %286 = vmatpush1.msra.mxu0 %v94
    %287 = vmatprep.subr.mxu0 %v103
    %288 = vmatpush1.msra.mxu0 %v102
    %289 = vmatprep.subr.mxu0 %v111
    %290 = vmatpush1.msra.mxu0 %v110
    %291 = vmatprep.subr.mxu0 %v119
    %292 = vmatpush1.msra.mxu0 %v118
    %293 = vmatprep.subr.mxu0 %v127
    %294 = vmatpush1.msra.mxu0 %v126
    %295 = vmatprep.subr.mxu0 %v135
    %296 = vmatpush1.msra.mxu0 %v134
    %297 = vmatprep.subr.mxu0 %v143
    %298 = vmatpush1.msra.mxu0 %v142
    %299 = vmatprep.subr.mxu0 %v151
    %300 = vmatpush1.msra.mxu0 %v150
    %301 = vmatprep.subr.mxu0 0.0
    %302 = vmatpush1.msra.mxu0 0.0
    %303 = vmatprep.subr.mxu0 0.0
    %304 = vmatpush1.msra.mxu0 0.0
    %305 = vmatprep.subr.mxu0 0.0
    %306 = vmatpush1.msra.mxu0 0.0
    %307 = vmatprep.subr.mxu0 0.0
    %308 = vmatpush1.msra.mxu0 0.0
    %309 = vmatprep.subr.mxu0 0.0
    %310 = vmatpush1.msra.mxu0 0.0
    %311 = vmatprep.subr.mxu0 0.0
    %312 = vmatpush1.msra.mxu0 0.0
    %313 = vmatprep.subr.mxu0 0.0
    %314 = vmatpush1.msra.mxu0 0.0
    %315 = vmatprep.subr.mxu0 0.0
    %316 = vmatpush1.msra.mxu0 0.0
    %317 = vmatprep.subr.mxu0 0.0
    %318 = vmatpush1.msra.mxu0 0.0
    %319 = vmatprep.subr.mxu0 0.0
    %320 = vmatpush1.msra.mxu0 0.0
    %321 = vmatprep.subr.mxu0 0.0
    %322 = vmatpush1.msra.mxu0 0.0
    %323 = vmatprep.subr.mxu0 0.0
    %324 = vmatpush1.msra.mxu0 0.0
    %325 = vmatprep.subr.mxu0 0.0
    %326 = vmatpush1.msra.mxu0 0.0
    %327 = vmatprep.subr.mxu0 0.0
    %328 = vmatpush1.msra.mxu0 0.0
    %329 = vmatprep.subr.mxu0 0.0
    %330 = vmatpush1.msra.mxu0 0.0
    %331 = vmatprep.subr.mxu0 0.0
    %332 = vmatpush1.msra.mxu0 0.0
    %333 = vmatprep.mubr.f32.mxu0 0.0
    %334 = vmatmul.mubr.f32.gmra.mrb[0].mxu0 %v27
    %v335 = vpop.f32.mrb[0].mxu0
    %v336 = vadd.f32 %v169, %v335
    %v337 = vpop.f32.mrb[0].mxu0
    %v338 = vadd.f32 %v173, %v337
    %339 = vdwg.mxu0
    %340 = vmatprep.subr.mxu0 %v33
    %341 = vmatpush1.msra.mxu0 %v32
    %342 = vmatprep.subr.mxu0 %v41
    %343 = vmatpush1.msra.mxu0 %v40
    %344 = vmatprep.subr.mxu0 %v49
    %345 = vmatpush1.msra.mxu0 %v48
    %346 = vmatprep.subr.mxu0 %v57
    %347 = vmatpush1.msra.mxu0 %v56
    %348 = vmatprep.subr.mxu0 %v65
    %349 = vmatpush1.msra.mxu0 %v64
    %350 = vmatprep.subr.mxu0 %v73
    %351 = vmatpush1.msra.mxu0 %v72
    %352 = vmatprep.subr.mxu0 %v81
    %353 = vmatpush1.msra.mxu0 %v80
    %354 = vmatprep.subr.mxu0 %v89
    %355 = vmatpush1.msra.mxu0 %v88
    %356 = vmatprep.subr.mxu0 %v97
    %357 = vmatpush1.msra.mxu0 %v96
    %358 = vmatprep.subr.mxu0 %v105
    %359 = vmatpush1.msra.mxu0 %v104
    %360 = vmatprep.subr.mxu0 %v113
    %361 = vmatpush1.msra.mxu0 %v112
    %362 = vmatprep.subr.mxu0 %v121
    %363 = vmatpush1.msra.mxu0 %v120
    %364 = vmatprep.subr.mxu0 %v129
    %365 = vmatpush1.msra.mxu0 %v128
    %366 = vmatprep.subr.mxu0 %v137
    %367 = vmatpush1.msra.mxu0 %v136
    %368 = vmatprep.subr.mxu0 %v145
    %369 = vmatpush1.msra.mxu0 %v144
    %370 = vmatprep.subr.mxu0 %v153
    %371 = vmatpush1.msra.mxu0 %v152
    %372 = vmatprep.subr.mxu0 0.0
    %373 = vmatpush1.msra.mxu0 0.0
    %374 = vmatprep.subr.mxu0 0.0
    %375 = vmatpush1.msra.mxu0 0.0
    %376 = vmatprep.subr.mxu0 0.0
    %377 = vmatpush1.msra.mxu0 0.0
    %378 = vmatprep.subr.mxu0 0.0
    %379 = vmatpush1.msra.mxu0 0.0
    %380 = vmatprep.subr.mxu0 0.0
    %381 = vmatpush1.msra.mxu0 0.0
    %382 = vmatprep.subr.mxu0 0.0
    %383 = vmatpush1.msra.mxu0 0.0
    %384 = vmatprep.subr.mxu0 0.0
    %385 = vmatpush1.msra.mxu0 0.0
    %386 = vmatprep.subr.mxu0 0.0
    %387 = vmatpush1.msra.mxu0 0.0
    %388 = vmatprep.subr.mxu0 0.0
    %389 = vmatpush1.msra.mxu0 0.0
    %390 = vmatprep.subr.mxu0 0.0
    %391 = vmatpush1.msra.mxu0 0.0
    %392 = vmatprep.subr.mxu0 0.0
    %393 = vmatpush1.msra.mxu0 0.0
    %394 = vmatprep.subr.mxu0 0.0
    %395 = vmatpush1.msra.mxu0 0.0
    %396 = vmatprep.subr.mxu0 0.0
    %397 = vmatpush1.msra.mxu0 0.0
    %398 = vmatprep.subr.mxu0 0.0
    %399 = vmatpush1.msra.mxu0 0.0
    %400 = vmatprep.subr.mxu0 0.0
    %401 = vmatpush1.msra.mxu0 0.0
    %402 = vmatprep.subr.mxu0 0.0
    %403 = vmatpush1.msra.mxu0 0.0
    %404 = vmatprep.mubr.f32.mxu0 0.0
    %405 = vmatmul.mubr.f32.gmra.mrb[0].mxu0 %v27
    %v406 = vpop.f32.mrb[0].mxu0
    %v407 = vadd.f32 %v177, %v406
    %v408 = vpop.f32.mrb[0].mxu0
    %v409 = vadd.f32 %v181, %v408
    %410 = vdwg.mxu0
    %411 = vmatprep.subr.mxu0 %v35
    %412 = vmatpush1.msra.mxu0 %v34
    %413 = vmatprep.subr.mxu0 %v43
    %414 = vmatpush1.msra.mxu0 %v42
    %415 = vmatprep.subr.mxu0 %v51
    %416 = vmatpush1.msra.mxu0 %v50
    %417 = vmatprep.subr.mxu0 %v59
    %418 = vmatpush1.msra.mxu0 %v58
    %419 = vmatprep.subr.mxu0 %v67
    %420 = vmatpush1.msra.mxu0 %v66
    %421 = vmatprep.subr.mxu0 %v75
    %422 = vmatpush1.msra.mxu0 %v74
    %423 = vmatprep.subr.mxu0 %v83
    %424 = vmatpush1.msra.mxu0 %v82
    %425 = vmatprep.subr.mxu0 %v91
    %426 = vmatpush1.msra.mxu0 %v90
    %427 = vmatprep.subr.mxu0 %v99
    %428 = vmatpush1.msra.mxu0 %v98
    %429 = vmatprep.subr.mxu0 %v107
    %430 = vmatpush1.msra.mxu0 %v106
    %431 = vmatprep.subr.mxu0 %v115
    %432 = vmatpush1.msra.mxu0 %v114
    %433 = vmatprep.subr.mxu0 %v123
    %434 = vmatpush1.msra.mxu0 %v122
    %435 = vmatprep.subr.mxu0 %v131
    %436 = vmatpush1.msra.mxu0 %v130
    %437 = vmatprep.subr.mxu0 %v139
    %438 = vmatpush1.msra.mxu0 %v138
    %439 = vmatprep.subr.mxu0 %v147
    %440 = vmatpush1.msra.mxu0 %v146
    %441 = vmatprep.subr.mxu0 %v155
    %442 = vmatpush1.msra.mxu0 %v154
    %443 = vmatprep.subr.mxu0 0.0
    %444 = vmatpush1.msra.mxu0 0.0
    %445 = vmatprep.subr.mxu0 0.0
    %446 = vmatpush1.msra.mxu0 0.0
    %447 = vmatprep.subr.mxu0 0.0
    %448 = vmatpush1.msra.mxu0 0.0
    %449 = vmatprep.subr.mxu0 0.0
    %450 = vmatpush1.msra.mxu0 0.0
    %451 = vmatprep.subr.mxu0 0.0
    %452 = vmatpush1.msra.mxu0 0.0
    %453 = vmatprep.subr.mxu0 0.0
    %454 = vmatpush1.msra.mxu0 0.0
    %455 = vmatprep.subr.mxu0 0.0
    %456 = vmatpush1.msra.mxu0 0.0
    %457 = vmatprep.subr.mxu0 0.0
    %458 = vmatpush1.msra.mxu0 0.0
    %459 = vmatprep.subr.mxu0 0.0
    %460 = vmatpush1.msra.mxu0 0.0
    %461 = vmatprep.subr.mxu0 0.0
    %462 = vmatpush1.msra.mxu0 0.0
    %463 = vmatprep.subr.mxu0 0.0
    %464 = vmatpush1.msra.mxu0 0.0
    %465 = vmatprep.subr.mxu0 0.0
    %466 = vmatpush1.msra.mxu0 0.0
    %467 = vmatprep.subr.mxu0 0.0
    %468 = vmatpush1.msra.mxu0 0.0
    %469 = vmatprep.subr.mxu0 0.0
    %470 = vmatpush1.msra.mxu0 0.0
    %471 = vmatprep.subr.mxu0 0.0
    %472 = vmatpush1.msra.mxu0 0.0
    %473 = vmatprep.subr.mxu0 0.0
    %474 = vmatpush1.msra.mxu0 0.0
    %475 = vmatprep.mubr.f32.mxu0 0.0
    %476 = vmatmul.mubr.f32.gmra.mrb[0].mxu0 %v27
    %v477 = vpop.f32.mrb[0].mxu0
    %v478 = vadd.f32 %v185, %v477
    %v479 = vpop.f32.mrb[0].mxu0
    %v480 = vadd.f32 %v189, %v479
    %481 = vdwg.mxu0
    %v482 = vmul.f32 %v265, 0.5
    %v483 = vmul.f32 %v267, 0.5
    %v484 = vmul.f32 %v336, 0.5
    %v485 = vmul.f32 %v338, 0.5
    %v486 = vmul.f32 %v407, 0.5
    %v487 = vmul.f32 %v409, 0.5
    %v488 = vmul.f32 %v478, 0.5
    %v489 = vmul.f32 %v480, 0.5
    %v490 = vtanh.pop %v482
    %v491 = vtanh.pop %v483
    %v492 = vtanh.pop %v484
    %v493 = vtanh.pop %v485
    %v494 = vtanh.pop %v486
    %v495 = vtanh.pop %v487
    %v496 = vtanh.pop %v488
    %v497 = vtanh.pop %v489
    %v498 = vmul.f32 %v490, 0.5
    %v499 = vmul.f32 %v491, 0.5
    %v500 = vmul.f32 %v492, 0.5
    %v501 = vmul.f32 %v493, 0.5
    %v502 = vmul.f32 %v494, 0.5
    %v503 = vmul.f32 %v495, 0.5
    %v504 = vmul.f32 %v496, 0.5
    %v505 = vmul.f32 %v497, 0.5
    %v506 = vadd.f32 %v498, 0.5
    %v507 = vadd.f32 %v499, 0.5
    %v508 = vadd.f32 %v500, 0.5
    %v509 = vadd.f32 %v501, 0.5
    %v510 = vadd.f32 %v502, 0.5
    %v511 = vadd.f32 %v503, 0.5
    %v512 = vadd.f32 %v504, 0.5
    %v513 = vadd.f32 %v505, 0.5
    %v514 = vld [vmem:[%s3] sm:$0xff]
    %v515 = vld [vmem:[%s3 + $0x8] sm:$0xff]
    %v516 = vld [vmem:[%s3 + $0x10] sm:$0xff]
    %v517 = vld [vmem:[%s3 + $0x18] sm:$0xff]
    %v518 = vld [vmem:[%s3 + $0x20] sm:$0xff]
    %v519 = vld [vmem:[%s3 + $0x28] sm:$0xff]
    %v520 = vld [vmem:[%s3 + $0x30] sm:$0xff]
    %v521 = vld [vmem:[%s3 + $0x38] sm:$0xff]
    %v522 = vld [vmem:[%s3 + $0x40] sm:$0xff]
    %v523 = vld [vmem:[%s3 + $0x48] sm:$0xff]
    %v524 = vld [vmem:[%s3 + $0x50] sm:$0xff]
    %v525 = vld [vmem:[%s3 + $0x58] sm:$0xff]
    %v526 = vld [vmem:[%s3 + $0x60] sm:$0xff]
    %v527 = vld [vmem:[%s3 + $0x68] sm:$0xff]
    %v528 = vld [vmem:[%s3 + $0x70] sm:$0xff]
    %v529 = vld [vmem:[%s3 + $0x78] sm:$0xff]
    %v530 = vld [vmem:[%s3 + $0x80] sm:$0xff]
    %v531 = vld [vmem:[%s3 + $0x88] sm:$0xff]
    %v532 = vld [vmem:[%s3 + $0x90] sm:$0xff]
    %v533 = vld [vmem:[%s3 + $0x98] sm:$0xff]
    %v534 = vld [vmem:[%s3 + $0xa0] sm:$0xff]
    %v535 = vld [vmem:[%s3 + $0xa8] sm:$0xff]
    %v536 = vld [vmem:[%s3 + $0xb0] sm:$0xff]
    %v537 = vld [vmem:[%s3 + $0xb8] sm:$0xff]
    %v538 = vld [vmem:[%s3 + $0xc0] sm:$0xff]
    %v539 = vld [vmem:[%s3 + $0xc8] sm:$0xff]
    %v540 = vld [vmem:[%s3 + $0xd0] sm:$0xff]
    %v541 = vld [vmem:[%s3 + $0xd8] sm:$0xff]
    %v542 = vld [vmem:[%s3 + $0xe0] sm:$0xff]
    %v543 = vld [vmem:[%s3 + $0xe8] sm:$0xff]
    %v544 = vld [vmem:[%s3 + $0xf0] sm:$0xff]
    %v545 = vld [vmem:[%s3 + $0xf8] sm:$0xff]
    %v546 = vld [vmem:[%s3 + $0x100] sm:$0xff]
    %v547 = vld [vmem:[%s3 + $0x108] sm:$0xff]
    %v548 = vld [vmem:[%s3 + $0x110] sm:$0xff]
    %v549 = vld [vmem:[%s3 + $0x118] sm:$0xff]
    %v550 = vld [vmem:[%s3 + $0x120] sm:$0xff]
    %v551 = vld [vmem:[%s3 + $0x128] sm:$0xff]
    %v552 = vld [vmem:[%s3 + $0x130] sm:$0xff]
    %v553 = vld [vmem:[%s3 + $0x138] sm:$0xff]
    %v554 = vld [vmem:[%s3 + $0x140] sm:$0xff]
    %v555 = vld [vmem:[%s3 + $0x148] sm:$0xff]
    %v556 = vld [vmem:[%s3 + $0x150] sm:$0xff]
    %v557 = vld [vmem:[%s3 + $0x158] sm:$0xff]
    %v558 = vld [vmem:[%s3 + $0x160] sm:$0xff]
    %v559 = vld [vmem:[%s3 + $0x168] sm:$0xff]
    %v560 = vld [vmem:[%s3 + $0x170] sm:$0xff]
    %v561 = vld [vmem:[%s3 + $0x178] sm:$0xff]
    %v562 = vld [vmem:[%s3 + $0x180] sm:$0xff]
    %v563 = vld [vmem:[%s3 + $0x188] sm:$0xff]
    %v564 = vld [vmem:[%s3 + $0x190] sm:$0xff]
    %v565 = vld [vmem:[%s3 + $0x198] sm:$0xff]
    %v566 = vld [vmem:[%s3 + $0x1a0] sm:$0xff]
    %v567 = vld [vmem:[%s3 + $0x1a8] sm:$0xff]
    %v568 = vld [vmem:[%s3 + $0x1b0] sm:$0xff]
    %v569 = vld [vmem:[%s3 + $0x1b8] sm:$0xff]
    %v570 = vld [vmem:[%s3 + $0x1c0] sm:$0xff]
    %v571 = vld [vmem:[%s3 + $0x1c8] sm:$0xff]
    %v572 = vld [vmem:[%s3 + $0x1d0] sm:$0xff]
    %v573 = vld [vmem:[%s3 + $0x1d8] sm:$0xff]
    %v574 = vld [vmem:[%s3 + $0x1e0] sm:$0xff]
    %v575 = vld [vmem:[%s3 + $0x1e8] sm:$0xff]
    %v576 = vld [vmem:[%s3 + $0x1f0] sm:$0xff]
    %v577 = vld [vmem:[%s3 + $0x1f8] sm:$0xff]
    %v578 = vld [vmem:[%s3 + $0x200] sm:$0xff]
    %v579 = vld [vmem:[%s3 + $0x208] sm:$0xff]
    %v580 = vld [vmem:[%s3 + $0x210] sm:$0xff]
    %v581 = vld [vmem:[%s3 + $0x218] sm:$0xff]
    %v582 = vld [vmem:[%s3 + $0x220] sm:$0xff]
    %v583 = vld [vmem:[%s3 + $0x228] sm:$0xff]
    %v584 = vld [vmem:[%s3 + $0x230] sm:$0xff]
    %v585 = vld [vmem:[%s3 + $0x238] sm:$0xff]
    %v586 = vld [vmem:[%s3 + $0x240] sm:$0xff]
    %v587 = vld [vmem:[%s3 + $0x248] sm:$0xff]
    %v588 = vld [vmem:[%s3 + $0x250] sm:$0xff]
    %v589 = vld [vmem:[%s3 + $0x258] sm:$0xff]
    %v590 = vld [vmem:[%s3 + $0x260] sm:$0xff]
    %v591 = vld [vmem:[%s3 + $0x268] sm:$0xff]
    %v592 = vld [vmem:[%s3 + $0x270] sm:$0xff]
    %v593 = vld [vmem:[%s3 + $0x278] sm:$0xff]
    %v594 = vld [vmem:[%s3 + $0x280] sm:$0xff]
    %v595 = vld [vmem:[%s3 + $0x288] sm:$0xff]
    %v596 = vld [vmem:[%s3 + $0x290] sm:$0xff]
    %v597 = vld [vmem:[%s3 + $0x298] sm:$0xff]
    %v598 = vld [vmem:[%s3 + $0x2a0] sm:$0xff]
    %v599 = vld [vmem:[%s3 + $0x2a8] sm:$0xff]
    %v600 = vld [vmem:[%s3 + $0x2b0] sm:$0xff]
    %v601 = vld [vmem:[%s3 + $0x2b8] sm:$0xff]
    %v602 = vld [vmem:[%s3 + $0x2c0] sm:$0xff]
    %v603 = vld [vmem:[%s3 + $0x2c8] sm:$0xff]
    %v604 = vld [vmem:[%s3 + $0x2d0] sm:$0xff]
    %v605 = vld [vmem:[%s3 + $0x2d8] sm:$0xff]
    %v606 = vld [vmem:[%s3 + $0x2e0] sm:$0xff]
    %v607 = vld [vmem:[%s3 + $0x2e8] sm:$0xff]
    %v608 = vld [vmem:[%s3 + $0x2f0] sm:$0xff]
    %v609 = vld [vmem:[%s3 + $0x2f8] sm:$0xff]
    %v610 = vld [vmem:[%s3 + $0x300] sm:$0xff]
    %v611 = vld [vmem:[%s3 + $0x308] sm:$0xff]
    %v612 = vld [vmem:[%s3 + $0x310] sm:$0xff]
    %v613 = vld [vmem:[%s3 + $0x318] sm:$0xff]
    %v614 = vld [vmem:[%s3 + $0x320] sm:$0xff]
    %v615 = vld [vmem:[%s3 + $0x328] sm:$0xff]
    %v616 = vld [vmem:[%s3 + $0x330] sm:$0xff]
    %v617 = vld [vmem:[%s3 + $0x338] sm:$0xff]
    %v618 = vld [vmem:[%s3 + $0x340] sm:$0xff]
    %v619 = vld [vmem:[%s3 + $0x348] sm:$0xff]
    %v620 = vld [vmem:[%s3 + $0x350] sm:$0xff]
    %v621 = vld [vmem:[%s3 + $0x358] sm:$0xff]
    %v622 = vld [vmem:[%s3 + $0x360] sm:$0xff]
    %v623 = vld [vmem:[%s3 + $0x368] sm:$0xff]
    %v624 = vld [vmem:[%s3 + $0x370] sm:$0xff]
    %v625 = vld [vmem:[%s3 + $0x378] sm:$0xff]
    %v626 = vld [vmem:[%s3 + $0x380] sm:$0xff]
    %v627 = vld [vmem:[%s3 + $0x388] sm:$0xff]
    %v628 = vld [vmem:[%s3 + $0x390] sm:$0xff]
    %v629 = vld [vmem:[%s3 + $0x398] sm:$0xff]
    %v630 = vld [vmem:[%s3 + $0x3a0] sm:$0xff]
    %v631 = vld [vmem:[%s3 + $0x3a8] sm:$0xff]
    %v632 = vld [vmem:[%s3 + $0x3b0] sm:$0xff]
    %v633 = vld [vmem:[%s3 + $0x3b8] sm:$0xff]
    %v634 = vld [vmem:[%s3 + $0x3c0] sm:$0xff]
    %v635 = vld [vmem:[%s3 + $0x3c8] sm:$0xff]
    %v636 = vld [vmem:[%s3 + $0x3d0] sm:$0xff]
    %v637 = vld [vmem:[%s3 + $0x3d8] sm:$0xff]
    %v638 = vld [vmem:[%s3 + $0x3e0] sm:$0xff]
    %v639 = vld [vmem:[%s3 + $0x3e8] sm:$0xff]
    %v640 = vld [vmem:[%s3 + $0x3f0] sm:$0xff]
    %v641 = vld [vmem:[%s3 + $0x3f8] sm:$0xff]
    %v642 = vld [vmem:[%s3 + $0x400] sm:$0xff]
    %v643 = vld [vmem:[%s3 + $0x408] sm:$0xff]
    %v644 = vld [vmem:[%s3 + $0x410] sm:$0xff]
    %v645 = vld [vmem:[%s3 + $0x418] sm:$0xff]
    %v646 = vld [vmem:[%s3 + $0x420] sm:$0xff]
    %v647 = vld [vmem:[%s3 + $0x428] sm:$0xff]
    %v648 = vld [vmem:[%s3 + $0x430] sm:$0xff]
    %v649 = vld [vmem:[%s3 + $0x438] sm:$0xff]
    %v650 = vld [vmem:[%s3 + $0x440] sm:$0xff]
    %v651 = vld [vmem:[%s3 + $0x448] sm:$0xff]
    %v652 = vld [vmem:[%s3 + $0x450] sm:$0xff]
    %v653 = vld [vmem:[%s3 + $0x458] sm:$0xff]
    %v654 = vld [vmem:[%s3 + $0x460] sm:$0xff]
    %v655 = vld [vmem:[%s3 + $0x468] sm:$0xff]
    %v656 = vld [vmem:[%s3 + $0x470] sm:$0xff]
    %v657 = vld [vmem:[%s3 + $0x478] sm:$0xff]
    %v658 = vld [vmem:[%s3 + $0x480] sm:$0xff]
    %v659 = vld [vmem:[%s3 + $0x488] sm:$0xff]
    %v660 = vld [vmem:[%s3 + $0x490] sm:$0xff]
    %v661 = vld [vmem:[%s3 + $0x498] sm:$0xff]
    %v662 = vld [vmem:[%s3 + $0x4a0] sm:$0xff]
    %v663 = vld [vmem:[%s3 + $0x4a8] sm:$0xff]
    %v664 = vld [vmem:[%s3 + $0x4b0] sm:$0xff]
    %v665 = vld [vmem:[%s3 + $0x4b8] sm:$0xff]
    %v666 = vld [vmem:[%s3 + $0x4c0] sm:$0xff]
    %v667 = vld [vmem:[%s3 + $0x4c8] sm:$0xff]
    %v668 = vld [vmem:[%s3 + $0x4d0] sm:$0xff]
    %v669 = vld [vmem:[%s3 + $0x4d8] sm:$0xff]
    %v670 = vld [vmem:[%s3 + $0x4e0] sm:$0xff]
    %v671 = vld [vmem:[%s3 + $0x4e8] sm:$0xff]
    %v672 = vld [vmem:[%s3 + $0x4f0] sm:$0xff]
    %v673 = vld [vmem:[%s3 + $0x4f8] sm:$0xff]
    %v674 = vld [vmem:[%s3 + $0x500] sm:$0xff]
    %v675 = vld [vmem:[%s3 + $0x508] sm:$0xff]
    %v676 = vld [vmem:[%s3 + $0x510] sm:$0xff]
    %v677 = vld [vmem:[%s3 + $0x518] sm:$0xff]
    %v678 = vld [vmem:[%s3 + $0x520] sm:$0xff]
    %v679 = vld [vmem:[%s3 + $0x528] sm:$0xff]
    %v680 = vld [vmem:[%s3 + $0x530] sm:$0xff]
    %v681 = vld [vmem:[%s3 + $0x538] sm:$0xff]
    %v682 = vld [vmem:[%s3 + $0x540] sm:$0xff]
    %v683 = vld [vmem:[%s3 + $0x548] sm:$0xff]
    %v684 = vld [vmem:[%s3 + $0x550] sm:$0xff]
    %v685 = vld [vmem:[%s3 + $0x558] sm:$0xff]
    %v686 = vld [vmem:[%s3 + $0x560] sm:$0xff]
    %v687 = vld [vmem:[%s3 + $0x568] sm:$0xff]
    %v688 = vld [vmem:[%s3 + $0x570] sm:$0xff]
    %v689 = vld [vmem:[%s3 + $0x578] sm:$0xff]
    %v690 = vld [vmem:[%s3 + $0x580] sm:$0xff]
    %v691 = vld [vmem:[%s3 + $0x588] sm:$0xff]
    %v692 = vld [vmem:[%s3 + $0x590] sm:$0xff]
    %v693 = vld [vmem:[%s3 + $0x598] sm:$0xff]
    %v694 = vld [vmem:[%s3 + $0x5a0] sm:$0xff]
    %v695 = vld [vmem:[%s3 + $0x5a8] sm:$0xff]
    %v696 = vld [vmem:[%s3 + $0x5b0] sm:$0xff]
    %v697 = vld [vmem:[%s3 + $0x5b8] sm:$0xff]
    %v698 = vld [vmem:[%s3 + $0x5c0] sm:$0xff]
    %v699 = vld [vmem:[%s3 + $0x5c8] sm:$0xff]
    %v700 = vld [vmem:[%s3 + $0x5d0] sm:$0xff]
    %v701 = vld [vmem:[%s3 + $0x5d8] sm:$0xff]
    %v702 = vld [vmem:[%s3 + $0x5e0] sm:$0xff]
    %v703 = vld [vmem:[%s3 + $0x5e8] sm:$0xff]
    %v704 = vld [vmem:[%s3 + $0x5f0] sm:$0xff]
    %v705 = vld [vmem:[%s3 + $0x5f8] sm:$0xff]
    %v706 = vld [vmem:[%s3 + $0x600] sm:$0xff]
    %v707 = vld [vmem:[%s3 + $0x608] sm:$0xff]
    %v708 = vld [vmem:[%s3 + $0x610] sm:$0xff]
    %v709 = vld [vmem:[%s3 + $0x618] sm:$0xff]
    %v710 = vld [vmem:[%s3 + $0x620] sm:$0xff]
    %v711 = vld [vmem:[%s3 + $0x628] sm:$0xff]
    %v712 = vld [vmem:[%s3 + $0x630] sm:$0xff]
    %v713 = vld [vmem:[%s3 + $0x638] sm:$0xff]
    %v714 = vld [vmem:[%s3 + $0x640] sm:$0xff]
    %v715 = vld [vmem:[%s3 + $0x648] sm:$0xff]
    %v716 = vld [vmem:[%s3 + $0x650] sm:$0xff]
    %v717 = vld [vmem:[%s3 + $0x658] sm:$0xff]
    %v718 = vld [vmem:[%s3 + $0x660] sm:$0xff]
    %v719 = vld [vmem:[%s3 + $0x668] sm:$0xff]
    %v720 = vld [vmem:[%s3 + $0x670] sm:$0xff]
    %v721 = vld [vmem:[%s3 + $0x678] sm:$0xff]
    %v722 = vld [vmem:[%s3 + $0x680] sm:$0xff]
    %v723 = vld [vmem:[%s3 + $0x688] sm:$0xff]
    %v724 = vld [vmem:[%s3 + $0x690] sm:$0xff]
    %v725 = vld [vmem:[%s3 + $0x698] sm:$0xff]
    %v726 = vld [vmem:[%s3 + $0x6a0] sm:$0xff]
    %v727 = vld [vmem:[%s3 + $0x6a8] sm:$0xff]
    %v728 = vld [vmem:[%s3 + $0x6b0] sm:$0xff]
    %v729 = vld [vmem:[%s3 + $0x6b8] sm:$0xff]
    %v730 = vld [vmem:[%s3 + $0x6c0] sm:$0xff]
    %v731 = vld [vmem:[%s3 + $0x6c8] sm:$0xff]
    %v732 = vld [vmem:[%s3 + $0x6d0] sm:$0xff]
    %v733 = vld [vmem:[%s3 + $0x6d8] sm:$0xff]
    %v734 = vld [vmem:[%s3 + $0x6e0] sm:$0xff]
    %v735 = vld [vmem:[%s3 + $0x6e8] sm:$0xff]
    %v736 = vld [vmem:[%s3 + $0x6f0] sm:$0xff]
    %v737 = vld [vmem:[%s3 + $0x6f8] sm:$0xff]
    %v738 = vld [vmem:[%s3 + $0x700] sm:$0xff]
    %v739 = vld [vmem:[%s3 + $0x708] sm:$0xff]
    %v740 = vld [vmem:[%s3 + $0x710] sm:$0xff]
    %v741 = vld [vmem:[%s3 + $0x718] sm:$0xff]
    %v742 = vld [vmem:[%s3 + $0x720] sm:$0xff]
    %v743 = vld [vmem:[%s3 + $0x728] sm:$0xff]
    %v744 = vld [vmem:[%s3 + $0x730] sm:$0xff]
    %v745 = vld [vmem:[%s3 + $0x738] sm:$0xff]
    %v746 = vld [vmem:[%s3 + $0x740] sm:$0xff]
    %v747 = vld [vmem:[%s3 + $0x748] sm:$0xff]
    %v748 = vld [vmem:[%s3 + $0x750] sm:$0xff]
    %v749 = vld [vmem:[%s3 + $0x758] sm:$0xff]
    %v750 = vld [vmem:[%s3 + $0x760] sm:$0xff]
    %v751 = vld [vmem:[%s3 + $0x768] sm:$0xff]
    %v752 = vld [vmem:[%s3 + $0x770] sm:$0xff]
    %v753 = vld [vmem:[%s3 + $0x778] sm:$0xff]
    %v754 = vld [vmem:[%s4] sm:$0x3]
    %v756 = vlaneseq
    %v757 = vshrl.u32 %v756, 7
    %v758 = vsub.s32 0, %v757
    %v759 = vrot.slane %v754, %v758
    %v760 = vlaneseq
    %v761 = vshrl.u32 %v760, 7
    %v762 = vsub.s32 1, %v761
    %v763 = vrot.slane %v754, %v762
    %vm766 = vcmask 523264
    %v768 = vsel %vm766, %v513, 0
    %770 = vmatprep.subr.mxu0 %v515
    %771 = vmatpush1.msra.mxu0 %v514
    %772 = vmatprep.subr.mxu0 %v517
    %773 = vmatpush1.msra.mxu0 %v516
    %774 = vmatprep.subr.mxu0 %v519
    %775 = vmatpush1.msra.mxu0 %v518
    %776 = vmatprep.subr.mxu0 %v521
    %777 = vmatpush1.msra.mxu0 %v520
    %778 = vmatprep.subr.mxu0 %v523
    %779 = vmatpush1.msra.mxu0 %v522
    %780 = vmatprep.subr.mxu0 %v525
    %781 = vmatpush1.msra.mxu0 %v524
    %782 = vmatprep.subr.mxu0 %v527
    %783 = vmatpush1.msra.mxu0 %v526
    %784 = vmatprep.subr.mxu0 %v529
    %785 = vmatpush1.msra.mxu0 %v528
    %786 = vmatprep.subr.mxu0 %v531
    %787 = vmatpush1.msra.mxu0 %v530
    %788 = vmatprep.subr.mxu0 %v533
    %789 = vmatpush1.msra.mxu0 %v532
    %790 = vmatprep.subr.mxu0 %v535
    %791 = vmatpush1.msra.mxu0 %v534
    %792 = vmatprep.subr.mxu0 %v537
    %793 = vmatpush1.msra.mxu0 %v536
    %794 = vmatprep.subr.mxu0 %v539
    %795 = vmatpush1.msra.mxu0 %v538
    %796 = vmatprep.subr.mxu0 %v541
    %797 = vmatpush1.msra.mxu0 %v540
    %798 = vmatprep.subr.mxu0 %v543
    %799 = vmatpush1.msra.mxu0 %v542
    %800 = vmatprep.subr.mxu0 %v545
    %801 = vmatpush1.msra.mxu0 %v544
    %802 = vmatprep.subr.mxu0 %v547
    %803 = vmatpush1.msra.mxu0 %v546
    %804 = vmatprep.subr.mxu0 %v549
    %805 = vmatpush1.msra.mxu0 %v548
    %806 = vmatprep.subr.mxu0 %v551
    %807 = vmatpush1.msra.mxu0 %v550
    %808 = vmatprep.subr.mxu0 %v553
    %809 = vmatpush1.msra.mxu0 %v552
    %810 = vmatprep.subr.mxu0 %v555
    %811 = vmatpush1.msra.mxu0 %v554
    %812 = vmatprep.subr.mxu0 %v557
    %813 = vmatpush1.msra.mxu0 %v556
    %814 = vmatprep.subr.mxu0 %v559
    %815 = vmatpush1.msra.mxu0 %v558
    %816 = vmatprep.subr.mxu0 %v561
    %817 = vmatpush1.msra.mxu0 %v560
    %818 = vmatprep.subr.mxu0 %v563
    %819 = vmatpush1.msra.mxu0 %v562
    %820 = vmatprep.subr.mxu0 %v565
    %821 = vmatpush1.msra.mxu0 %v564
    %822 = vmatprep.subr.mxu0 %v567
    %823 = vmatpush1.msra.mxu0 %v566
    %824 = vmatprep.subr.mxu0 %v569
    %825 = vmatpush1.msra.mxu0 %v568
    %826 = vmatprep.subr.mxu0 %v571
    %827 = vmatpush1.msra.mxu0 %v570
    %828 = vmatprep.subr.mxu0 %v573
    %829 = vmatpush1.msra.mxu0 %v572
    %830 = vmatprep.subr.mxu0 %v575
    %831 = vmatpush1.msra.mxu0 %v574
    %832 = vmatprep.subr.mxu0 %v577
    %833 = vmatpush1.msra.mxu0 %v576
    %834 = vmatprep.mubr.f32.mxu0 %v507
    %835 = vmatmul.mubr.f32.gmra.mrb[0].mxu0 %v506
    %v836 = vpop.f32.mrb[0].mxu0
    %v837 = vadd.f32 %v759, %v836
    %v838 = vpop.f32.mrb[0].mxu0
    %v839 = vadd.f32 %v763, %v838
    %840 = vdwg.mxu0
    %841 = vmatprep.subr.mxu0 %v579
    %842 = vmatpush1.msra.mxu0 %v578
    %843 = vmatprep.subr.mxu0 %v581
    %844 = vmatpush1.msra.mxu0 %v580
    %845 = vmatprep.subr.mxu0 %v583
    %846 = vmatpush1.msra.mxu0 %v582
    %847 = vmatprep.subr.mxu0 %v585
    %848 = vmatpush1.msra.mxu0 %v584
    %849 = vmatprep.subr.mxu0 %v587
    %850 = vmatpush1.msra.mxu0 %v586
    %851 = vmatprep.subr.mxu0 %v589
    %852 = vmatpush1.msra.mxu0 %v588
    %853 = vmatprep.subr.mxu0 %v591
    %854 = vmatpush1.msra.mxu0 %v590
    %855 = vmatprep.subr.mxu0 %v593
    %856 = vmatpush1.msra.mxu0 %v592
    %857 = vmatprep.subr.mxu0 %v595
    %858 = vmatpush1.msra.mxu0 %v594
    %859 = vmatprep.subr.mxu0 %v597
    %860 = vmatpush1.msra.mxu0 %v596
    %861 = vmatprep.subr.mxu0 %v599
    %862 = vmatpush1.msra.mxu0 %v598
    %863 = vmatprep.subr.mxu0 %v601
    %864 = vmatpush1.msra.mxu0 %v600
    %865 = vmatprep.subr.mxu0 %v603
    %866 = vmatpush1.msra.mxu0 %v602
    %867 = vmatprep.subr.mxu0 %v605
    %868 = vmatpush1.msra.mxu0 %v604
    %869 = vmatprep.subr.mxu0 %v607
    %870 = vmatpush1.msra.mxu0 %v606
    %871 = vmatprep.subr.mxu0 %v609
    %872 = vmatpush1.msra.mxu0 %v608
    %873 = vmatprep.subr.mxu0 %v611
    %874 = vmatpush1.msra.mxu0 %v610
    %875 = vmatprep.subr.mxu0 %v613
    %876 = vmatpush1.msra.mxu0 %v612
    %877 = vmatprep.subr.mxu0 %v615
    %878 = vmatpush1.msra.mxu0 %v614
    %879 = vmatprep.subr.mxu0 %v617
    %880 = vmatpush1.msra.mxu0 %v616
    %881 = vmatprep.subr.mxu0 %v619
    %882 = vmatpush1.msra.mxu0 %v618
    %883 = vmatprep.subr.mxu0 %v621
    %884 = vmatpush1.msra.mxu0 %v620
    %885 = vmatprep.subr.mxu0 %v623
    %886 = vmatpush1.msra.mxu0 %v622
    %887 = vmatprep.subr.mxu0 %v625
    %888 = vmatpush1.msra.mxu0 %v624
    %889 = vmatprep.subr.mxu0 %v627
    %890 = vmatpush1.msra.mxu0 %v626
    %891 = vmatprep.subr.mxu0 %v629
    %892 = vmatpush1.msra.mxu0 %v628
    %893 = vmatprep.subr.mxu0 %v631
    %894 = vmatpush1.msra.mxu0 %v630
    %895 = vmatprep.subr.mxu0 %v633
    %896 = vmatpush1.msra.mxu0 %v632
    %897 = vmatprep.subr.mxu0 %v635
    %898 = vmatpush1.msra.mxu0 %v634
    %899 = vmatprep.subr.mxu0 %v637
    %900 = vmatpush1.msra.mxu0 %v636
    %901 = vmatprep.subr.mxu0 %v639
    %902 = vmatpush1.msra.mxu0 %v638
    %903 = vmatprep.subr.mxu0 %v641
    %904 = vmatpush1.msra.mxu0 %v640
    %905 = vmatprep.mubr.f32.mxu0 %v509
    %906 = vmatmul.mubr.f32.gmra.mrb[0].mxu0 %v508
    %v907 = vpop.f32.mrb[0].mxu0
    %v908 = vadd.f32 %v837, %v907
    %v909 = vpop.f32.mrb[0].mxu0
    %v910 = vadd.f32 %v839, %v909
    %911 = vdwg.mxu0
    %912 = vmatprep.subr.mxu0 %v643
    %913 = vmatpush1.msra.mxu0 %v642
    %914 = vmatprep.subr.mxu0 %v645
    %915 = vmatpush1.msra.mxu0 %v644
    %916 = vmatprep.subr.mxu0 %v647
    %917 = vmatpush1.msra.mxu0 %v646
    %918 = vmatprep.subr.mxu0 %v649
    %919 = vmatpush1.msra.mxu0 %v648
    %920 = vmatprep.subr.mxu0 %v651
    %921 = vmatpush1.msra.mxu0 %v650
    %922 = vmatprep.subr.mxu0 %v653
    %923 = vmatpush1.msra.mxu0 %v652
    %924 = vmatprep.subr.mxu0 %v655
    %925 = vmatpush1.msra.mxu0 %v654
    %926 = vmatprep.subr.mxu0 %v657
    %927 = vmatpush1.msra.mxu0 %v656
    %928 = vmatprep.subr.mxu0 %v659
    %929 = vmatpush1.msra.mxu0 %v658
    %930 = vmatprep.subr.mxu0 %v661
    %931 = vmatpush1.msra.mxu0 %v660
    %932 = vmatprep.subr.mxu0 %v663
    %933 = vmatpush1.msra.mxu0 %v662
    %934 = vmatprep.subr.mxu0 %v665
    %935 = vmatpush1.msra.mxu0 %v664
    %936 = vmatprep.subr.mxu0 %v667
    %937 = vmatpush1.msra.mxu0 %v666
    %938 = vmatprep.subr.mxu0 %v669
    %939 = vmatpush1.msra.mxu0 %v668
    %940 = vmatprep.subr.mxu0 %v671
    %941 = vmatpush1.msra.mxu0 %v670
    %942 = vmatprep.subr.mxu0 %v673
    %943 = vmatpush1.msra.mxu0 %v672
    %944 = vmatprep.subr.mxu0 %v675
    %945 = vmatpush1.msra.mxu0 %v674
    %946 = vmatprep.subr.mxu0 %v677
    %947 = vmatpush1.msra.mxu0 %v676
    %948 = vmatprep.subr.mxu0 %v679
    %949 = vmatpush1.msra.mxu0 %v678
    %950 = vmatprep.subr.mxu0 %v681
    %951 = vmatpush1.msra.mxu0 %v680
    %952 = vmatprep.subr.mxu0 %v683
    %953 = vmatpush1.msra.mxu0 %v682
    %954 = vmatprep.subr.mxu0 %v685
    %955 = vmatpush1.msra.mxu0 %v684
    %956 = vmatprep.subr.mxu0 %v687
    %957 = vmatpush1.msra.mxu0 %v686
    %958 = vmatprep.subr.mxu0 %v689
    %959 = vmatpush1.msra.mxu0 %v688
    %960 = vmatprep.subr.mxu0 %v691
    %961 = vmatpush1.msra.mxu0 %v690
    %962 = vmatprep.subr.mxu0 %v693
    %963 = vmatpush1.msra.mxu0 %v692
    %964 = vmatprep.subr.mxu0 %v695
    %965 = vmatpush1.msra.mxu0 %v694
    %966 = vmatprep.subr.mxu0 %v697
    %967 = vmatpush1.msra.mxu0 %v696
    %968 = vmatprep.subr.mxu0 %v699
    %969 = vmatpush1.msra.mxu0 %v698
    %970 = vmatprep.subr.mxu0 %v701
    %971 = vmatpush1.msra.mxu0 %v700
    %972 = vmatprep.subr.mxu0 %v703
    %973 = vmatpush1.msra.mxu0 %v702
    %974 = vmatprep.subr.mxu0 %v705
    %975 = vmatpush1.msra.mxu0 %v704
    %976 = vmatprep.mubr.f32.mxu0 %v511
    %977 = vmatmul.mubr.f32.gmra.mrb[0].mxu0 %v510
    %v978 = vpop.f32.mrb[0].mxu0
    %v979 = vadd.f32 %v908, %v978
    %v980 = vpop.f32.mrb[0].mxu0
    %v981 = vadd.f32 %v910, %v980
    %982 = vdwg.mxu0
    %983 = vmatprep.subr.mxu0 %v707
    %984 = vmatpush1.msra.mxu0 %v706
    %985 = vmatprep.subr.mxu0 %v709
    %986 = vmatpush1.msra.mxu0 %v708
    %987 = vmatprep.subr.mxu0 %v711
    %988 = vmatpush1.msra.mxu0 %v710
    %989 = vmatprep.subr.mxu0 %v713
    %990 = vmatpush1.msra.mxu0 %v712
    %991 = vmatprep.subr.mxu0 %v715
    %992 = vmatpush1.msra.mxu0 %v714
    %993 = vmatprep.subr.mxu0 %v717
    %994 = vmatpush1.msra.mxu0 %v716
    %995 = vmatprep.subr.mxu0 %v719
    %996 = vmatpush1.msra.mxu0 %v718
    %997 = vmatprep.subr.mxu0 %v721
    %998 = vmatpush1.msra.mxu0 %v720
    %999 = vmatprep.subr.mxu0 %v723
    %1000 = vmatpush1.msra.mxu0 %v722
    %1001 = vmatprep.subr.mxu0 %v725
    %1002 = vmatpush1.msra.mxu0 %v724
    %1003 = vmatprep.subr.mxu0 %v727
    %1004 = vmatpush1.msra.mxu0 %v726
    %1005 = vmatprep.subr.mxu0 %v729
    %1006 = vmatpush1.msra.mxu0 %v728
    %1007 = vmatprep.subr.mxu0 %v731
    %1008 = vmatpush1.msra.mxu0 %v730
    %1009 = vmatprep.subr.mxu0 %v733
    %1010 = vmatpush1.msra.mxu0 %v732
    %1011 = vmatprep.subr.mxu0 %v735
    %1012 = vmatpush1.msra.mxu0 %v734
    %1013 = vmatprep.subr.mxu0 %v737
    %1014 = vmatpush1.msra.mxu0 %v736
    %1015 = vmatprep.subr.mxu0 %v739
    %1016 = vmatpush1.msra.mxu0 %v738
    %1017 = vmatprep.subr.mxu0 %v741
    %1018 = vmatpush1.msra.mxu0 %v740
    %1019 = vmatprep.subr.mxu0 %v743
    %1020 = vmatpush1.msra.mxu0 %v742
    %1021 = vmatprep.subr.mxu0 %v745
    %1022 = vmatpush1.msra.mxu0 %v744
    %1023 = vmatprep.subr.mxu0 %v747
    %1024 = vmatpush1.msra.mxu0 %v746
    %1025 = vmatprep.subr.mxu0 %v749
    %1026 = vmatpush1.msra.mxu0 %v748
    %1027 = vmatprep.subr.mxu0 %v751
    %1028 = vmatpush1.msra.mxu0 %v750
    %1029 = vmatprep.subr.mxu0 %v753
    %1030 = vmatpush1.msra.mxu0 %v752
    %1031 = vmatprep.subr.mxu0 0.0
    %1032 = vmatpush1.msra.mxu0 0.0
    %1033 = vmatprep.subr.mxu0 0.0
    %1034 = vmatpush1.msra.mxu0 0.0
    %1035 = vmatprep.subr.mxu0 0.0
    %1036 = vmatpush1.msra.mxu0 0.0
    %1037 = vmatprep.subr.mxu0 0.0
    %1038 = vmatpush1.msra.mxu0 0.0
    %1039 = vmatprep.subr.mxu0 0.0
    %1040 = vmatpush1.msra.mxu0 0.0
    %1041 = vmatprep.subr.mxu0 0.0
    %1042 = vmatpush1.msra.mxu0 0.0
    %1043 = vmatprep.subr.mxu0 0.0
    %1044 = vmatpush1.msra.mxu0 0.0
    %1045 = vmatprep.subr.mxu0 0.0
    %1046 = vmatpush1.msra.mxu0 0.0
    %1047 = vmatprep.mubr.f32.mxu0 %v768
    %1048 = vmatmul.mubr.f32.gmra.mrb[0].mxu0 %v512
    %v1049 = vpop.f32.mrb[0].mxu0
    %v1050 = vadd.f32 %v979, %v1049
    %v1051 = vpop.f32.mrb[0].mxu0
    %v1052 = vadd.f32 %v981, %v1051
    %1053 = vdwg.mxu0
    %v1054 = vmul.f32 %v1050, 0.5
    %v1055 = vmul.f32 %v1052, 0.5
    %v1056 = vtanh.pop %v1054
    %v1057 = vtanh.pop %v1055
    %v1058 = vmul.f32 %v1056, 0.5
    %v1059 = vmul.f32 %v1057, 0.5
    %v1060 = vadd.f32 %v1058, 0.5
    %v1061 = vadd.f32 %v1059, 0.5
    %v1062 = vld [vmem:[%s5] sm:$0xff]
    %v1063 = vld [vmem:[%s5 + $0x8] sm:$0xff]
    %v1064 = vld [vmem:[%s5 + $0x10] sm:$0xff]
    %v1065 = vld [vmem:[%s5 + $0x18] sm:$0xff]
    %v1066 = vld [vmem:[%s5 + $0x20] sm:$0xff]
    %v1067 = vld [vmem:[%s5 + $0x28] sm:$0xff]
    %v1068 = vld [vmem:[%s5 + $0x30] sm:$0xff]
    %v1069 = vld [vmem:[%s5 + $0x38] sm:$0xff]
    %v1070 = vld [vmem:[%s5 + $0x40] sm:$0xff]
    %v1071 = vld [vmem:[%s5 + $0x48] sm:$0xff]
    %v1072 = vld [vmem:[%s5 + $0x50] sm:$0xff]
    %v1073 = vld [vmem:[%s5 + $0x58] sm:$0xff]
    %v1074 = vld [vmem:[%s5 + $0x60] sm:$0xff]
    %v1075 = vld [vmem:[%s5 + $0x68] sm:$0xff]
    %v1076 = vld [vmem:[%s5 + $0x70] sm:$0xff]
    %v1077 = vld [vmem:[%s5 + $0x78] sm:$0xff]
    %v1078 = vld [vmem:[%s5 + $0x80] sm:$0xff]
    %v1079 = vld [vmem:[%s5 + $0x88] sm:$0xff]
    %v1080 = vld [vmem:[%s5 + $0x90] sm:$0xff]
    %v1081 = vld [vmem:[%s5 + $0x98] sm:$0xff]
    %v1082 = vld [vmem:[%s6] sm:$0x1]
    %vm1083 = vcmask 261120
    %v1085 = vsel %vm1083, %v1061, 0
    %1087 = vmatprep.subr.mxu0 0.0
    %1088 = vmatpush1.msra.mxu0 %v1062
    %1089 = vmatprep.subr.mxu0 0.0
    %1090 = vmatpush1.msra.mxu0 %v1063
    %1091 = vmatprep.subr.mxu0 0.0
    %1092 = vmatpush1.msra.mxu0 %v1064
    %1093 = vmatprep.subr.mxu0 0.0
    %1094 = vmatpush1.msra.mxu0 %v1065
    %1095 = vmatprep.subr.mxu0 0.0
    %1096 = vmatpush1.msra.mxu0 %v1066
    %1097 = vmatprep.subr.mxu0 0.0
    %1098 = vmatpush1.msra.mxu0 %v1067
    %1099 = vmatprep.subr.mxu0 0.0
    %1100 = vmatpush1.msra.mxu0 %v1068
    %1101 = vmatprep.subr.mxu0 0.0
    %1102 = vmatpush1.msra.mxu0 %v1069
    %1103 = vmatprep.subr.mxu0 0.0
    %1104 = vmatpush1.msra.mxu0 %v1070
    %1105 = vmatprep.subr.mxu0 0.0
    %1106 = vmatpush1.msra.mxu0 %v1071
    %1107 = vmatprep.subr.mxu0 0.0
    %1108 = vmatpush1.msra.mxu0 %v1072
    %1109 = vmatprep.subr.mxu0 0.0
    %1110 = vmatpush1.msra.mxu0 %v1073
    %1111 = vmatprep.subr.mxu0 0.0
    %1112 = vmatpush1.msra.mxu0 %v1074
    %1113 = vmatprep.subr.mxu0 0.0
    %1114 = vmatpush1.msra.mxu0 %v1075
    %1115 = vmatprep.subr.mxu0 0.0
    %1116 = vmatpush1.msra.mxu0 %v1076
    %1117 = vmatprep.subr.mxu0 0.0
    %1118 = vmatpush1.msra.mxu0 %v1077
    %1119 = vmatprep.subr.mxu0 0.0
    %1120 = vmatpush1.msra.mxu0 %v1078
    %1121 = vmatprep.subr.mxu0 0.0
    %1122 = vmatpush1.msra.mxu0 %v1079
    %1123 = vmatprep.subr.mxu0 0.0
    %1124 = vmatpush1.msra.mxu0 %v1080
    %1125 = vmatprep.subr.mxu0 0.0
    %1126 = vmatpush1.msra.mxu0 %v1081
    %1127 = vmatprep.subr.mxu0 0.0
    %1128 = vmatpush1.msra.mxu0 0.0
    %1129 = vmatprep.subr.mxu0 0.0
    %1130 = vmatpush1.msra.mxu0 0.0
    %1131 = vmatprep.subr.mxu0 0.0
    %1132 = vmatpush1.msra.mxu0 0.0
    %1133 = vmatprep.subr.mxu0 0.0
    %1134 = vmatpush1.msra.mxu0 0.0
    %1135 = vmatprep.subr.mxu0 0.0
    %1136 = vmatpush1.msra.mxu0 0.0
    %1137 = vmatprep.subr.mxu0 0.0
    %1138 = vmatpush1.msra.mxu0 0.0
    %1139 = vmatprep.subr.mxu0 0.0
    %1140 = vmatpush1.msra.mxu0 0.0
    %1141 = vmatprep.subr.mxu0 0.0
    %1142 = vmatpush1.msra.mxu0 0.0
    %1143 = vmatprep.subr.mxu0 0.0
    %1144 = vmatpush1.msra.mxu0 0.0
    %1145 = vmatprep.subr.mxu0 0.0
    %1146 = vmatpush1.msra.mxu0 0.0
    %1147 = vmatprep.subr.mxu0 0.0
    %1148 = vmatpush1.msra.mxu0 0.0
    %1149 = vmatprep.subr.mxu0 0.0
    %1150 = vmatpush1.msra.mxu0 0.0
    %1151 = vmatprep.mubr.f32.mxu0 %v1085
    %1152 = vmatmul.mubr.f32.gmra.mrb[0].mxu0 %v1060
    %v1153 = vpop.f32.mrb[0].mxu0
    %v1154 = vadd.f32 %v1082, %v1153
    %v1155 = vpop.f32.mrb[0].mxu0
    %1156 = vdwg.mxu0
    %v1157 = vmul.f32 %v1154, 0.5
    %v1158 = vtanh.pop %v1157
    %v1159 = vmul.f32 %v1158, 0.5
    %v1160 = vadd.f32 %v1159, 0.5
    %vm1161 = vcmask 122880
    %1162 = vst.msk [vmem:[#allocation2] sm:$0x1] %vm1161, %v1160
    // Predicated region
    $region30: #{tpu_custom_call.1} parent=1 // pred_check
      _
    $region31: #{tpu_custom_call.1} parent=1 // pred_check_branch
      %1164 = sbr.rel (0) target = $region33
    $region32: #{tpu_custom_call.1} parent=1 // pred_region
      %s1166 = ssub.s32 16, 16
      %1167 = vsyncadd [#allocation3], %s1166
      %s1169 = sshll.u32 [#allocation2], 4
      %s1170 = int_to_ptr.vmem [resolvable:$true] %s1169
      %1172 = dma.vmem_to_hbm [thread:$0]  %s1170, 16, %s7, [#allocation3]
    $region33: #{tpu_custom_call.1} parent=1 // pred_fallthru
      _
    // Predicated region
    $region34: #{tpu_custom_call.1} parent=1 // pred_check
      _
    $region35: #{tpu_custom_call.1} parent=1 // pred_check_branch
      %1174 = sbr.rel (0) target = $region37
    $region36: #{tpu_custom_call.1} parent=1 // pred_region
      %1175 = dma.done [#allocation3], 16
    $region37: #{tpu_custom_call.1} parent=1 // pred_fallthru
      _
    %1176 = vsyncpa [#allocation3], 1

</llo_original>
